<compile_context>
chip_gen: v7x
topology: tpu7x:2x2x1
jax: 0.10.0
libtpu: 0.0.40
codegen_flags: <defaults>
</compile_context>

<pallas_src>
import numpy as np

import jax
import jax.numpy as jnp
from jax import lax
from jax.experimental import pallas as pl
from jax.experimental.pallas import tpu as pltpu


def _duplicate_interleave(m):
    # (T, D/2) -> (T, D): each column duplicated next to itself.
    return jnp.repeat(m, 2, axis=-1)


def _xpos_tables(length, head_dim, scale_base=512, offset=0, downscale=False):
    """Exact port of XPOS.forward table construction (plain-JAX glue)."""
    scale_buf = (jnp.arange(0, head_dim, 2, dtype=jnp.float32) + 0.4 * head_dim) / (1.4 * head_dim)
    min_pos = -(length + offset) // 2          # Python floor division, like torch
    max_pos = length + offset + min_pos
    pos = jnp.arange(min_pos, max_pos, dtype=jnp.float32)                      # (T,)
    scale = scale_buf[None, :] ** (pos[:, None] / float(scale_base))           # (T, D/2)
    seq_len, dim = scale.shape
    inv_freq = 1.0 / 10000.0 ** (jnp.arange(0, dim, dtype=jnp.float32) / dim)  # (D/2,)
    sinusoid = jnp.arange(0, seq_len, dtype=jnp.float32)[:, None] * inv_freq[None, :]
    sin, cos = jnp.sin(sinusoid), jnp.cos(sinusoid)
    if seq_len > length:
        scale, sin, cos = scale[-length:], sin[-length:], cos[-length:]
    if downscale:
        scale = 1.0 / scale
    sin_full = _duplicate_interleave(sin * scale)   # (length, head_dim)
    cos_full = _duplicate_interleave(cos * scale)   # (length, head_dim)
    return sin_full, cos_full


def _xpos_kernel(x_ref, cos_ref, sin_ref, o_ref):
    x = x_ref[...]                               # (TR, N), N == full flattened L*D
    n = x.shape[-1]
    # rotate_every_two over the flattened (L*D) lane axis:
    #   even lane 2k   -> -x[2k+1]   (sign lives in the precomputed sin table)
    #   odd  lane 2k+1 -> +x[2k]
    # Pairs never straddle a head boundary because D is even, so a whole-axis
    # lane roll reproduces the per-pair swap; the wraps at lanes 0 and n-1 are
    # never selected (lane 0 is even -> x_next, lane n-1 is odd -> x_prev).
    x_next = pltpu.roll(x, n - 1, axis=1)        # x_next[k] = x[(k+1) % n]
    x_prev = pltpu.roll(x, 1, axis=1)            # x_prev[k] = x[(k-1) % n]
    lane = lax.broadcasted_iota(jnp.int32, x.shape, 1)
    rot = jnp.where((lane & 1) == 0, x_next, x_prev)
    o_ref[...] = (x * cos_ref[...] + rot * sin_ref[...]).astype(o_ref.dtype)


def _vmem_capacity_bytes():
    try:
        cap = getattr(pltpu.get_tpu_info(), "vmem_capacity_bytes", None)
        if cap:
            return int(cap)
    except Exception:
        pass
    return 64 * 2**20   # conservative: v7x per-TC VMEM


def _choose_row_tile(rows, lane_width, elem_bytes, target_bytes):
    """Row tile: multiple of 8 (or the full axis), ~target_bytes per block,
    clamped so the parallel grid has >= 2 steps (v7x megacore occupancy)."""
    row_bytes = lane_width * elem_bytes
    tr = max(8, int(target_bytes // row_bytes) // 8 * 8)
    if rows > 8:
        half = ((((rows + 1) // 2) + 7) // 8) * 8   # ceil(rows/2) rounded up to x8
        tr = min(tr, half)
    return int(min(tr, rows))


def xpos_forward(x, scale_base=512, offset=0, downscale=False):
    b, l1, l2, d = x.shape
    assert l2 == l1, "PyTorch broadcasting requires x.shape[2] == x.shape[1]"
    assert d % 2 == 0, "rotate_every_two requires an even head_dim"

    sin_full, cos_full = _xpos_tables(l1, d, scale_base, offset, downscale)

    # Fold the pair-swap sign into the sin table; operand choice happens
    # in-kernel via a lane-parity select.
    lane_is_even = (jnp.arange(d) % 2) == 0
    sin_signed = jnp.where(lane_is_even[None, :], -sin_full, sin_full)

    n = l2 * d                                   # lane-dense flattened last dim
    rows = b * l1                                # merged batch + seq-row axis
    itemsize = np.dtype(x.dtype).itemsize
    x_flat = x.reshape(rows, n)                  # contiguous reshape: free
    cos_flat = cos_full.reshape(1, n).astype(jnp.float32)
    sin_flat = sin_signed.reshape(1, n).astype(jnp.float32)
    # Perf note: unmasked full-width stores need n % 128 == 0 (e.g. D=32 with
    # L a multiple of 4). Correctness does not depend on it.

    vmem_cap = _vmem_capacity_bytes()
    vmem_cap_limit = min(96 * 2**20, (vmem_cap * 3) // 4)   # ~48 MiB v7x, ~96 MiB v5e/v6e
    target_block = max(2 * 2**20, min(16 * 2**20, vmem_cap_limit // 6))
    tr = _choose_row_tile(rows, n, itemsize, target_block)
    grid = (pl.cdiv(rows, tr),)
    block_bytes = tr * n * itemsize
    vmem_limit = int(min(vmem_cap_limit, max(32 * 2**20, 6 * block_bytes)))

    cost = pl.CostEstimate(
        flops=6 * rows * n,
        transcendentals=0,
        bytes_accessed=2 * rows * n * itemsize + 2 * n * 4 * grid[0],
    )

    out_flat = pl.pallas_call(
        _xpos_kernel,
        out_shape=jax.ShapeDtypeStruct((rows, n), x.dtype),
        grid=grid,
        in_specs=[
            pl.BlockSpec((tr, n), lambda t: (t, 0)),   # lane axis NOT tiled (required)
            pl.BlockSpec((1, n), lambda t: (0, 0)),
            pl.BlockSpec((1, n), lambda t: (0, 0)),
        ],
        out_specs=pl.BlockSpec((tr, n), lambda t: (t, 0)),
        compiler_params=pltpu.CompilerParams(
            dimension_semantics=("parallel",),
            vmem_limit_bytes=vmem_limit,
        ),
        cost_estimate=cost,
    )(x_flat, cos_flat, sin_flat)
    return out_flat.reshape(b, l1, l2, d)


def _reference(x, scale_base=512, offset=0, downscale=False):
    """Pure-JAX port of the PyTorch forward, for a correctness check."""
    b, l1, l2, d = x.shape
    sin_full, cos_full = _xpos_tables(l1, d, scale_base, offset, downscale)
    x1 = x[..., ::2]
    x2 = x[..., 1::2]
    rot = jnp.stack((-x2, x1), axis=-1).reshape(x.shape)
    return x * cos_full + rot * sin_full


if __name__ == "__main__":
    key = jax.random.PRNGKey(0)
    B, L, D = 2, 8, 32          # head_dim = 32, scale_base = 512 (default)
    x = jax.random.normal(key, (B, L, L, D), dtype=jnp.float32)

    out = xpos_forward(x)
    out = jax.block_until_ready(out)

    ref = _reference(x)
    assert out.shape == x.shape and out.dtype == x.dtype
    assert jnp.allclose(out, ref, atol=1e-5, rtol=1e-5), "mismatch vs reference"
    print("KERNEL_OK")
</pallas_src>

<mosaic_0001>
module attributes {stable_mosaic.version = 11 : i64} {
  func.func @_xpos_kernel(%arg0: i32, %arg1: memref<8x256xf32, #tpu.memory_space<vmem>>, %arg2: memref<1x256xf32, #tpu.memory_space<vmem>>, %arg3: memref<1x256xf32, #tpu.memory_space<vmem>>, %arg4: memref<8x256xf32, #tpu.memory_space<vmem>>) attributes {dimension_semantics = [#tpu.dimension_semantics<parallel>], iteration_bounds = array<i64: 2>, scalar_prefetch = 0 : i64, scratch_operands = 0 : i64, tpu.core_type = #tpu.core_type<tc>, window_params = [{transform_indices = @transform_0, window_bounds = array<i64: 8, 256>}, {pipeline_mode = #tpu.pipeline_mode<synchronous>, transform_indices = @transform_1, window_bounds = array<i64: 1, 256>}, {pipeline_mode = #tpu.pipeline_mode<synchronous>, transform_indices = @transform_2, window_bounds = array<i64: 1, 256>}, {transform_indices = @transform_3, window_bounds = array<i64: 8, 256>}]} {
    %c0 = arith.constant 0 : index
    %c0_0 = arith.constant 0 : index
    %0 = vector.load %arg1[%c0, %c0_0] : memref<8x256xf32, #tpu.memory_space<vmem>>, vector<8x256xf32>
    %c255_i32 = arith.constant 255 : i32
    %1 = tpu.dynamic_rotate %0 by %c255_i32 dim 1 : vector<8x256xf32>, i32 -> vector<8x256xf32>
    %c1_i32 = arith.constant 1 : i32
    %2 = tpu.dynamic_rotate %0 by %c1_i32 dim 1 : vector<8x256xf32>, i32 -> vector<8x256xf32>
    %3 = tpu.iota {dimensions = array<i32: 1>} : vector<8x256xi32>
    %c1_i32_1 = arith.constant 1 : i32
    %4 = vector.broadcast %c1_i32_1 : i32 to vector<8x256xi32>
    %5 = arith.andi %3, %4 : vector<8x256xi32>
    %c0_i32 = arith.constant 0 : i32
    %6 = vector.broadcast %c0_i32 : i32 to vector<8x256xi32>
    %7 = arith.cmpi eq, %5, %6 : vector<8x256xi32>
    %8 = arith.select %7, %1, %2 : vector<8x256xi1>, vector<8x256xf32>
    %c0_2 = arith.constant 0 : index
    %c0_3 = arith.constant 0 : index
    %9 = vector.load %arg2[%c0_2, %c0_3] : memref<1x256xf32, #tpu.memory_space<vmem>>, vector<1x256xf32>
    %10 = vector.broadcast %9 : vector<1x256xf32> to vector<8x256xf32>
    %11 = arith.mulf %0, %10 : vector<8x256xf32>
    %c0_4 = arith.constant 0 : index
    %c0_5 = arith.constant 0 : index
    %12 = vector.load %arg3[%c0_4, %c0_5] : memref<1x256xf32, #tpu.memory_space<vmem>>, vector<1x256xf32>
    %13 = vector.broadcast %12 : vector<1x256xf32> to vector<8x256xf32>
    %14 = arith.mulf %8, %13 : vector<8x256xf32>
    %15 = arith.addf %11, %14 : vector<8x256xf32>
    %c0_6 = arith.constant 0 : index
    %c0_7 = arith.constant 0 : index
    %16 = vector.load %arg4[%c0_6, %c0_7] : memref<8x256xf32, #tpu.memory_space<vmem>>, vector<8x256xf32>
    tpu.vector_store %arg4[%c0_6, %c0_7], %15 {strides = array<i32>} : memref<8x256xf32, #tpu.memory_space<vmem>>, vector<8x256xf32>,
    return
  }
  func.func @transform_0(%arg0: i32) -> (i32, i32) {
    %c0_i32 = arith.constant 0 : i32
    %c0_i32_0 = arith.constant 0 : i32
    return %arg0, %c0_i32 : i32, i32
  }
  func.func @transform_1(%arg0: i32) -> (i32, i32) {
    %c0_i32 = arith.constant 0 : i32
    %c0_i32_0 = arith.constant 0 : i32
    %c0_i32_1 = arith.constant 0 : i32
    return %c0_i32, %c0_i32_0 : i32, i32
  }
  func.func @transform_2(%arg0: i32) -> (i32, i32) {
    %c0_i32 = arith.constant 0 : i32
    %c0_i32_0 = arith.constant 0 : i32
    %c0_i32_1 = arith.constant 0 : i32
    return %c0_i32, %c0_i32_0 : i32, i32
  }
  func.func @transform_3(%arg0: i32) -> (i32, i32) {
    %c0_i32 = arith.constant 0 : i32
    %c0_i32_0 = arith.constant 0 : i32
    return %arg0, %c0_i32 : i32, i32
  }
}

</mosaic_0001>

<llo_original>
// kernel: tpu_custom_call.1
$region0: #{tpu_custom_call.1}
  #allocation0 [shape = 'u32[]', space=smem, size = 0x4, offset = 0x4, fixed_abs, tag = 'smem constant byte address 0x4 - core index']
  #allocation1 [shape = 'u32[144,128]{1,0:T(1,128)}', space=vmem, size = 0x12000, scoped, tag = 'internal scratch']
  %s0 = inlined_call_operand.hbm [shape: f32[16,256], index: 0, kind: input, shape index: {}]
  %s1 = inlined_call_operand.vmem [shape: f32[1,256], index: 1, kind: input, shape index: {}]
  %s2 = inlined_call_operand.vmem [shape: f32[1,256], index: 2, kind: input, shape index: {}]
  %s3 = inlined_call_operand.hbm [shape: f32[16,256], index: 3, kind: output, shape index: {}]
  %s4 = sld [smem:[#allocation0]]
  $region49: #{tpu_custom_call.1} parent=0
    _
  %s6 = ssub.s32 1, %s4
  %s7 = scalar_select 0, %s6, %s4
  $region1: #{tpu_custom_call.1} parent=0
    #allocation2 [shape = 'u8[16384]{0}', space=vmem, size = 0x4000, scoped, tag = 'input window, operand 0']
    #allocation3 [shape = 's32[2]{0}', space=sflag, size = 0x8, scoped, tag = 'scoped memory for tpu_custom_call.1']
    #allocation4 [shape = 's32[2]{0}', space=sflag, size = 0x8, scoped, tag = 'scoped memory for tpu_custom_call.1']
    #allocation5 [shape = 'u8[16384]{0}', space=vmem, size = 0x4000, scoped, tag = 'output window, operand 0']
    %8 = vsyncpa [#allocation3], 0
    %s9 = scalar_lea.sflag [#allocation3], 1
    %10 = vsyncpa %s9, 0
    %11 = vsyncpa [#allocation4], 0
    %s12 = scalar_lea.sflag [#allocation4], 1
    %13 = vsyncpa %s12, 0
    loop: start=0, step=1, limit=4
    $region2: #{tpu_custom_call.1} parent=1 // loop_pre_header
      _
    $region3: #{tpu_custom_call.1} parent=1 // loop_header
      %s15 = sphi 0, %s19
      %p16 = scmp.ge.s32.totalorder %s15, 4
      %s25 = sphi 0, %s27
      %s28 = sphi 0, %s25
      %s29 = sphi 0, %s28
      %s45 = sphi 0, %s29
      %s49 = sphi 0, %s49
      %s51 = sphi 0, %s49
      %s52 = sphi 0, %s51
      %s66 = sphi 0, %s52
      %s70 = sphi 0, %s70
      %s72 = sphi 0, %s70
      %s73 = sphi 0, %s72
      %s87 = sphi 0, %s73
      %s93 = sphi 0, %s95
      %s96 = sphi 0, %s93
      %s97 = sphi 0, %s96
      %s113 = sphi 0, %s97
    $region4: #{tpu_custom_call.1} parent=1 // loop_header_branch
      %18 = sbr.rel (%p16) target = $region8
    $region5: #{tpu_custom_call.1} parent=1 // loop_body
      %s20 = ssub.s32 %s15, 1
      %s21 = ssub.s32 %s15, 2
      %s22 = sadd.s32 %s15, 1
      %s23 = ssub.s32 %s15, %s22
      %p24 = scmp.eq.s32.totalorder %s23, 0
      %s26 = sadd.s32 %s25, 1
      %s27 = scalar_select %p24, %s25, %s26
      %p30 = pneg %p24
      %p31 = scmp.eq.s32.totalorder %s15, 1
      %p32 = por %p30, %p31
      %p33 = scmp.ne.s32.totalorder %s25, %s28
      %p34 = scmp.eq.s32.totalorder %s15, 0
      %p35 = por %p33, %p34
      %p36 = scmp.ne.s32.totalorder %s25, %s28
      %p37 = scmp.eq.s32.totalorder %s20, 1
      %p38 = por %p36, %p37
      %p39 = scmp.ne.s32.totalorder %s28, %s29
      %p40 = scmp.eq.s32.totalorder %s20, 0
      %p41 = por %p39, %p40
      %p42 = scmp.ne.s32.totalorder %s28, %s29
      %p43 = scmp.eq.s32.totalorder %s21, 1
      %p44 = por %p42, %p43
      %p46 = scmp.ne.s32.totalorder %s29, %s45
      %p47 = scmp.eq.s32.totalorder %s21, 0
      %p48 = por %p46, %p47
      %s50 = sadd.s32 %s49, 1
      %p53 = scmp.eq.s32.totalorder %s15, 1
      %p54 = scmp.ne.s32.totalorder %s49, %s51
      %p55 = scmp.eq.s32.totalorder %s15, 0
      %p56 = por %p54, %p55
      %p57 = scmp.ne.s32.totalorder %s49, %s51
      %p58 = scmp.eq.s32.totalorder %s20, 1
      %p59 = por %p57, %p58
      %p60 = scmp.ne.s32.totalorder %s51, %s52
      %p61 = scmp.eq.s32.totalorder %s20, 0
      %p62 = por %p60, %p61
      %p63 = scmp.ne.s32.totalorder %s51, %s52
      %p64 = scmp.eq.s32.totalorder %s21, 1
      %p65 = por %p63, %p64
      %p67 = scmp.ne.s32.totalorder %s52, %s66
      %p68 = scmp.eq.s32.totalorder %s21, 0
      %p69 = por %p67, %p68
      %s71 = sadd.s32 %s70, 1
      %p74 = scmp.eq.s32.totalorder %s15, 1
      %p75 = scmp.ne.s32.totalorder %s70, %s72
      %p76 = scmp.eq.s32.totalorder %s15, 0
      %p77 = por %p75, %p76
      %p78 = scmp.ne.s32.totalorder %s70, %s72
      %p79 = scmp.eq.s32.totalorder %s20, 1
      %p80 = por %p78, %p79
      %p81 = scmp.ne.s32.totalorder %s72, %s73
      %p82 = scmp.eq.s32.totalorder %s20, 0
      %p83 = por %p81, %p82
      %p84 = scmp.ne.s32.totalorder %s72, %s73
      %p85 = scmp.eq.s32.totalorder %s21, 1
      %p86 = por %p84, %p85
      %p88 = scmp.ne.s32.totalorder %s73, %s87
      %p89 = scmp.eq.s32.totalorder %s21, 0
      %p90 = por %p88, %p89
      %s91 = ssub.s32 %s15, %s22
      %p92 = scmp.eq.s32.totalorder %s91, 0
      %s94 = sadd.s32 %s93, 1
      %s95 = scalar_select %p92, %s93, %s94
      %p98 = pneg %p92
      %p99 = scmp.eq.s32.totalorder %s15, 1
      %p100 = por %p98, %p99
      %p101 = scmp.ne.s32.totalorder %s93, %s96
      %p102 = scmp.eq.s32.totalorder %s15, 0
      %p103 = por %p101, %p102
      %p104 = scmp.ne.s32.totalorder %s93, %s96
      %p105 = scmp.eq.s32.totalorder %s20, 1
      %p106 = por %p104, %p105
      %p107 = scmp.ne.s32.totalorder %s96, %s97
      %p108 = scmp.eq.s32.totalorder %s20, 0
      %p109 = por %p107, %p108
      %p110 = scmp.ne.s32.totalorder %s96, %s97
      %p111 = scmp.eq.s32.totalorder %s21, 1
      %p112 = por %p110, %p111
      %p114 = scmp.ne.s32.totalorder %s97, %s113
      %p115 = scmp.eq.s32.totalorder %s21, 0
      %p116 = por %p114, %p115
      %p117 = scmp.le.s32.totalorder 1, %s15
      %p118 = scmp.lt.s32.totalorder %s15, 3
      %p119 = pnand %p117, %p118
      %p120 = pneg %p119
      // Predicated region
      $region9: #{tpu_custom_call.1} parent=5 // pred_check
        _
      $region10: #{tpu_custom_call.1} parent=5 // pred_check_branch
        %122 = sbr.rel (%p119) target = $region12
      $region11: #{tpu_custom_call.1} parent=5 // pred_region
        %s123 = ssub.s32 %s15, 1
        // Predicated region
        $region13: #{tpu_custom_call.1} parent=11 // pred_check
          %p124 = pneg %p62
        $region14: #{tpu_custom_call.1} parent=11 // pred_check_branch
          %126 = sbr.rel (%p124) target = $region16
        $region15: #{tpu_custom_call.1} parent=11 // pred_region
          _
        $region16: #{tpu_custom_call.1} parent=11 // pred_fallthru
          _
        // Predicated region
        $region17: #{tpu_custom_call.1} parent=11 // pred_check
          %p127 = pneg %p83
        $region18: #{tpu_custom_call.1} parent=11 // pred_check_branch
          %129 = sbr.rel (%p127) target = $region20
        $region19: #{tpu_custom_call.1} parent=11 // pred_region
          _
        $region20: #{tpu_custom_call.1} parent=11 // pred_fallthru
          _
      $region12: #{tpu_custom_call.1} parent=5 // pred_fallthru
        _
      %p130 = scmp.lt.s32.totalorder %s15, 2
      // Predicated region
      $region21: #{tpu_custom_call.1} parent=5 // pred_check
        %p131 = pneg %p130
      $region22: #{tpu_custom_call.1} parent=5 // pred_check_branch
        %133 = sbr.rel (%p131) target = $region24
      $region23: #{tpu_custom_call.1} parent=5 // pred_region
        // Predicated region
        $region25: #{tpu_custom_call.1} parent=23 // pred_check
          %p134 = pneg %p35
        $region26: #{tpu_custom_call.1} parent=23 // pred_check_branch
          %136 = sbr.rel (%p134) target = $region28
        $region27: #{tpu_custom_call.1} parent=23 // pred_region
          %s137 = sand.u32 %s25, 1
          %s138 = scalar_lea.sflag [#allocation3], %s137
          %s139 = sand.u32 %s25, 1
          %s140 = smul.addr %s139, 16
          %s141 = scalar_lea.vmem [#allocation2], %s140
          %s143 = ssub.s32 256, 256
          %144 = vsyncadd %s138, %s143
          %s145 = smul.addr %s15, 2
          %s146 = smul.addr %s145, 128
          %s147 = scalar_lea.hbm %s0, %s146
          %s149 = sshll.u32 %s141, 4
          %s150 = int_to_ptr.vmem [resolvable:$true] %s149
          %152 = dma.hbm_to_vmem [thread:$0]  %s147, 256, %s150, %s138
        $region28: #{tpu_custom_call.1} parent=23 // pred_fallthru
          _
      $region24: #{tpu_custom_call.1} parent=5 // pred_fallthru
        _
      %p153 = scmp.le.s32.totalorder 1, %s15
      %p154 = scmp.lt.s32.totalorder %s15, 3
      %p155 = pnand %p153, %p154
      %p156 = pneg %p155
      // Predicated region
      $region29: #{tpu_custom_call.1} parent=5 // pred_check
        _
      $region30: #{tpu_custom_call.1} parent=5 // pred_check_branch
        %158 = sbr.rel (%p155) target = $region32
      $region31: #{tpu_custom_call.1} parent=5 // pred_region
        %s159 = ssub.s32 %s15, 1
        %s160 = sand.u32 %s28, 1
        %s161 = scalar_lea.sflag [#allocation3], %s160
        %s162 = sand.u32 %s28, 1
        %s163 = smul.addr %s162, 16
        %s164 = scalar_lea.vmem [#allocation2], %s163
        // Predicated region
        $region33: #{tpu_custom_call.1} parent=31 // pred_check
          %p165 = pneg %p41
        $region34: #{tpu_custom_call.1} parent=31 // pred_check_branch
          %167 = sbr.rel (%p165) target = $region36
        $region35: #{tpu_custom_call.1} parent=31 // pred_region
          %168 = dma.done %s161, 256
        $region36: #{tpu_custom_call.1} parent=31 // pred_fallthru
          _
        %s169 = sand.u32 %s28, 1
        %s170 = scalar_lea.sflag [#allocation3], %s169
        %s171 = sand.u32 %s28, 1
        %s172 = smul.addr %s171, 16
        %s173 = scalar_lea.vmem [#allocation2], %s172
        %p174 = pneg %p41
        %p175 = pneg %p38
        %p176 = pneg %p62
        %p177 = pneg %p59
        %p178 = pneg %p83
        %p179 = pneg %p80
        %p180 = pneg %p109
        %p181 = pneg %p106
        %s182 = sand.u32 %s96, 1
        %s183 = scalar_lea.sflag [#allocation4], %s182
        %s184 = sand.u32 %s96, 1
        %s185 = smul.addr %s184, 16
        %s186 = scalar_lea.vmem [#allocation5], %s185
        %v187 = vld [vmem:[%s164] sm:$0xff]
        %v188 = vld [vmem:[%s164 + $0x8] sm:$0xff]
        %189 = vrot.lane.b32.xlu0 %v187, 127
        %v190 = vpop.permute.xlu0 %189
        %191 = vrot.lane.b32.xlu0 %v188, 127
        %v192 = vpop.permute.xlu0 %191
        %v193 = vlaneseq
        %v194 = vand.u32 %v193, 127
        %vm195 = vcmp.lt.s32.totalorder %v194, 127
        %v196 = vsel %vm195, %v190, %v192
        %v197 = vsel %vm195, %v192, %v190
        %198 = vrot.lane.b32.xlu0 %v187, 1
        %v199 = vpop.permute.xlu0 %198
        %200 = vrot.lane.b32.xlu0 %v188, 1
        %v201 = vpop.permute.xlu0 %200
        %vm202 = vcmp.lt.s32.totalorder %v194, 1
        %v203 = vsel %vm202, %v199, %v201
        %v204 = vsel %vm202, %v201, %v199
        %v205 = vadd.s32 %v194, 128
        %v206 = vand.u32 %v194, 1
        %v207 = vand.u32 %v205, 1
        %vm208 = vcmp.eq.s32.totalorder %v206, 0
        %vm209 = vcmp.eq.s32.totalorder %v207, 0
        %v210 = vsel %vm208, %v196, %v204
        %v211 = vsel %vm209, %v197, %v203
        %v212 = vld [vmem:[%s1] sm:$0x3]
        %v214 = vlaneseq
        %v215 = vshrl.u32 %v214, 7
        %v216 = vsub.s32 0, %v215
        %v217 = vrot.slane %v212, %v216
        %v218 = vlaneseq
        %v219 = vshrl.u32 %v218, 7
        %v220 = vsub.s32 1, %v219
        %v221 = vrot.slane %v212, %v220
        %v224 = vmul.f32 %v187, %v217
        %v225 = vmul.f32 %v188, %v221
        %v226 = vld [vmem:[%s2] sm:$0x3]
        %v228 = vlaneseq
        %v229 = vshrl.u32 %v228, 7
        %v230 = vsub.s32 0, %v229
        %v231 = vrot.slane %v226, %v230
        %v232 = vlaneseq
        %v233 = vshrl.u32 %v232, 7
        %v234 = vsub.s32 1, %v233
        %v235 = vrot.slane %v226, %v234
        %v238 = vmul.f32 %v210, %v231
        %v239 = vmul.f32 %v211, %v235
        %v240 = vadd.f32 %v224, %v238
        %v241 = vadd.f32 %v225, %v239
        %242 = vst [vmem:[%s186] sm:$0xff] %v240
        %243 = vst [vmem:[%s186 + $0x8] sm:$0xff] %v241
        %s244 = sand.u32 %s96, 1
        %s245 = scalar_lea.sflag [#allocation4], %s244
        %s246 = sand.u32 %s96, 1
        %s247 = smul.addr %s246, 16
        %s248 = scalar_lea.vmem [#allocation5], %s247
        // Predicated region
        $region37: #{tpu_custom_call.1} parent=31 // pred_check
          %p249 = pneg %p106
        $region38: #{tpu_custom_call.1} parent=31 // pred_check_branch
          %251 = sbr.rel (%p249) target = $region40
        $region39: #{tpu_custom_call.1} parent=31 // pred_region
          %s253 = ssub.s32 256, 256
          %254 = vsyncadd %s245, %s253
          %s255 = smul.addr %s20, 2
          %s256 = smul.addr %s255, 128
          %s257 = scalar_lea.hbm %s3, %s256
          %s259 = sshll.u32 %s248, 4
          %s260 = int_to_ptr.vmem [resolvable:$true] %s259
          %262 = dma.vmem_to_hbm [thread:$0]  %s260, 256, %s257, %s245
        $region40: #{tpu_custom_call.1} parent=31 // pred_fallthru
          _
      $region32: #{tpu_custom_call.1} parent=5 // pred_fallthru
        _
      %p263 = scmp.le.s32.totalorder 2, %s15
      // Predicated region
      $region41: #{tpu_custom_call.1} parent=5 // pred_check
        %p264 = pneg %p263
      $region42: #{tpu_custom_call.1} parent=5 // pred_check_branch
        %266 = sbr.rel (%p264) target = $region44
      $region43: #{tpu_custom_call.1} parent=5 // pred_region
        %s267 = ssub.s32 %s15, 2
        // Predicated region
        $region45: #{tpu_custom_call.1} parent=43 // pred_check
          %p268 = pneg %p112
        $region46: #{tpu_custom_call.1} parent=43 // pred_check_branch
          %270 = sbr.rel (%p268) target = $region48
        $region47: #{tpu_custom_call.1} parent=43 // pred_region
          %s271 = sand.u32 %s97, 1
          %s272 = scalar_lea.sflag [#allocation4], %s271
          %s273 = sand.u32 %s97, 1
          %s274 = smul.addr %s273, 16
          %s275 = scalar_lea.vmem [#allocation5], %s274
          %276 = dma.done %s272, 256
        $region48: #{tpu_custom_call.1} parent=43 // pred_fallthru
          _
      $region44: #{tpu_custom_call.1} parent=5 // pred_fallthru
        _
    $region6: #{tpu_custom_call.1} parent=1 // loop_footer
      %s19 = sadd.s32 1, %s15
    $region7: #{tpu_custom_call.1} parent=1 // loop_footer_branch
      %14 = sbr.rel target = $region3
    $region8: #{tpu_custom_call.1} parent=1 // loop_exit
      _
    %277 = vsyncpa [#allocation3], 1
    %s278 = scalar_lea.sflag [#allocation3], 1
    %279 = vsyncpa %s278, 1
    %280 = vsyncpa [#allocation4], 1
    %s281 = scalar_lea.sflag [#allocation4], 1
    %282 = vsyncpa %s281, 1

</llo_original>
